<compile_context>
chip_gen: v7x
topology: tpu7x:2x2x1
jax: 0.10.0
libtpu: 0.0.40
codegen_flags: <defaults>
</compile_context>

<pallas_src>
import functools

import jax
import jax.numpy as jnp
from jax.experimental import pallas as pl
from jax.experimental.pallas import tpu as pltpu


def _agg_linear_kernel(x_ref, w_ref, b_ref, o_ref, *, fold_relations):
    """One grid step: out[b, :, tile] = W' @ x'[..., tile] + bias.

    Block shapes:
      x_ref : (R, 1, C_in, TM)   all relations of one batch's pixel tile (channels-first)
      w_ref : (C_out, R*C_in) if fold_relations else (C_out, C_in)  -- VMEM-resident
      b_ref : (C_out, 1)         lane-broadcast bias, VMEM-resident
      o_ref : (1, C_out, TM)     lane-dense output tile
    """
    if fold_relations:
        r, _, c_in, tm = x_ref.shape
        x = x_ref[...].reshape(r * c_in, tm)      # free sublane merge when C_in % 8 == 0 (f32)
    else:
        x = jnp.sum(x_ref[...], axis=(0, 1))      # VPU sum over relations -> (C_in, TM)
    y = jnp.dot(w_ref[...], x, preferred_element_type=jnp.float32) + b_ref[...]
    o_ref[0] = y.astype(o_ref.dtype)


def _round_up(v, m):
    return -(-v // m) * m


def _pick_pixel_tile(hw, n_batch, per_col_bytes, *, budget_bytes, max_tm):
    """Largest legal pixel tile: multiple of 128 (or exactly HW), under the
    double-buffered VMEM budget, and split >= 2-way when N == 1 so both of
    v7x's TensorCores get work."""
    cap = min(max_tm, max(128, budget_bytes // max(per_col_bytes, 1)))
    tm = hw if hw <= cap else max(128, (cap // 128) * 128)
    if n_batch == 1 and hw > 128:
        tm = min(tm, max(128, _round_up(-(-hw // 2), 128)))
    return tm


def aggregate_sum_then_linear(ho_stacked, weight, bias, *, max_tm=8192,
                              vmem_budget_bytes=24 << 20):
    """Fused FeatureAggregator('sum') + 1x1 Conv2d forward.

    ho_stacked: (R, N, C_in, H, W)  relation-stacked NCHW activations
    weight:     (C_out, C_in)       squeezed 1x1 conv kernel
    bias:       (C_out,)
    returns     (N, C_out, H, W)
    """
    R, N, C_in, H, W = ho_stacked.shape
    C_out = weight.shape[0]
    HW = H * W

    in_bytes = jnp.dtype(ho_stacked.dtype).itemsize
    out_bytes = in_bytes

    # pure reshapes -- stay channels-first, no extra HBM pass
    x = ho_stacked.reshape(R, N, C_in, HW)
    b2d = bias.reshape(C_out, 1).astype(jnp.float32)

    # Fold relations into the contraction (K = R*C_in) whenever the in-kernel
    # reshape is a free sublane merge for this dtype.
    sublane = 8 * max(1, 4 // in_bytes)           # 8 for f32, 16 for bf16
    fold_relations = (R == 1) or (C_in % sublane == 0)
    w_use = jnp.tile(weight, (1, R)) if (fold_relations and R > 1) else weight
    k_eff = w_use.shape[1]

    # Pixel-tile selection under the double-buffered VMEM budget.
    per_col = 2 * R * C_in * in_bytes + 2 * C_out * out_bytes
    tm = _pick_pixel_tile(HW, N, per_col,
                          budget_bytes=vmem_budget_bytes, max_tm=max_tm)
    n_pix = pl.cdiv(HW, tm)                       # tail block (if any) masked by Pallas

    # Only raise the scoped-VMEM limit when the tile actually needs it
    # (v5e default scope is 16 MiB; stay <= 48 MiB so v7x's 64 MiB physical fits).
    needed = per_col * tm + (C_out * k_eff + C_out) * 4
    vmem_limit = min(48 << 20, int(needed * 1.75)) if needed > (12 << 20) else None

    cost = pl.CostEstimate(
        flops=2 * N * C_out * k_eff * HW,
        transcendentals=0,
        bytes_accessed=(R * N * C_in * HW * in_bytes
                        + N * C_out * HW * out_bytes
                        + C_out * k_eff * 4 + C_out * 4),
    )

    kernel = functools.partial(_agg_linear_kernel, fold_relations=fold_relations)

    out = pl.pallas_call(
        kernel,
        out_shape=jax.ShapeDtypeStruct((N, C_out, HW), ho_stacked.dtype),
        grid_spec=pltpu.PrefetchScalarGridSpec(
            num_scalar_prefetch=0,
            grid=(N, n_pix),                                        # fully parallel
            in_specs=[
                pl.BlockSpec((R, 1, C_in, tm), lambda b, i: (0, b, 0, i)),
                pl.BlockSpec((C_out, k_eff), lambda b, i: (0, 0)),  # resident weight
                pl.BlockSpec((C_out, 1), lambda b, i: (0, 0)),      # resident bias
            ],
            out_specs=pl.BlockSpec((1, C_out, tm), lambda b, i: (b, 0, i)),
        ),
        compiler_params=pltpu.CompilerParams(
            dimension_semantics=("parallel", "parallel"),
            vmem_limit_bytes=vmem_limit),
        cost_estimate=cost,
    )(x, w_use, b2d)

    return out.reshape(N, C_out, H, W)


def linear_1x1(x_nchw, weight, bias, **kw):
    """Plain 1x1 Conv2d (the `linear` module): single-relation special case."""
    return aggregate_sum_then_linear(x_nchw[None], weight, bias, **kw)


if __name__ == "__main__":
    key = jax.random.PRNGKey(0)
    k_x, k_w, k_b = jax.random.split(key, 3)

    # Small shapes consistent with MixPropRGCN.agg('sum') + mlp:
    #   R relations, batch N, C_in = (gdepth+1)*conv_channel (small demo value),
    #   num_nodes x seq_len spatial grid.
    R, N, C_in, Hn, Ls = 3, 2, 8, 16, 16
    C_out = 16

    ho = jax.random.normal(k_x, (R, N, C_in, Hn, Ls), dtype=jnp.float32)
    bound = 1.0 / (C_in ** 0.5)
    weight = jax.random.uniform(k_w, (C_out, C_in), minval=-bound, maxval=bound,
                                dtype=jnp.float32)
    bias = jax.random.uniform(k_b, (C_out,), minval=-bound, maxval=bound,
                              dtype=jnp.float32)

    # fused sum-over-relations + 1x1 conv
    out = jax.block_until_ready(aggregate_sum_then_linear(ho, weight, bias))

    summed = ho.sum(axis=0)
    ref = jnp.einsum("nchw,oc->nohw", summed, weight) + bias[None, :, None, None]
    assert out.shape == (N, C_out, Hn, Ls)
    assert jnp.allclose(out, ref, atol=1e-4, rtol=1e-4), \
        float(jnp.max(jnp.abs(out - ref)))

    # single 1x1 conv (the `linear` module on its own, R == 1)
    out1 = jax.block_until_ready(linear_1x1(ho[0], weight, bias))
    ref1 = jnp.einsum("nchw,oc->nohw", ho[0], weight) + bias[None, :, None, None]
    assert jnp.allclose(out1, ref1, atol=1e-4, rtol=1e-4)

    print("KERNEL_OK")
</pallas_src>

<mosaic_0001>
module attributes {stable_mosaic.version = 11 : i64} {
  func.func @_agg_linear_kernel(%arg0: i32, %arg1: i32, %arg2: memref<3x1x8x256xf32, #tpu.memory_space<vmem>>, %arg3: memref<16x24xf32, #tpu.memory_space<vmem>>, %arg4: memref<16x1xf32, #tpu.memory_space<vmem>>, %arg5: memref<1x16x256xf32, #tpu.memory_space<vmem>>) attributes {dimension_semantics = [#tpu.dimension_semantics<parallel>, #tpu.dimension_semantics<parallel>], iteration_bounds = array<i64: 2, 1>, scalar_prefetch = 0 : i64, scratch_operands = 0 : i64, tpu.core_type = #tpu.core_type<tc>, window_params = [{transform_indices = @transform_0, window_bounds = array<i64: 3, 1, 8, 256>}, {pipeline_mode = #tpu.pipeline_mode<synchronous>, transform_indices = @transform_1, window_bounds = array<i64: 16, 24>}, {pipeline_mode = #tpu.pipeline_mode<synchronous>, transform_indices = @transform_2, window_bounds = array<i64: 16, 1>}, {transform_indices = @transform_3, window_bounds = array<i64: 1, 16, 256>}]} {
    %c0 = arith.constant 0 : index
    %c0_0 = arith.constant 0 : index
    %c0_1 = arith.constant 0 : index
    %c0_2 = arith.constant 0 : index
    %0 = vector.load %arg2[%c0, %c0_0, %c0_1, %c0_2] : memref<3x1x8x256xf32, #tpu.memory_space<vmem>>, vector<3x1x8x256xf32>
    %1 = vector.shape_cast %0 : vector<3x1x8x256xf32> to vector<24x256xf32>
    %c0_3 = arith.constant 0 : index
    %c0_4 = arith.constant 0 : index
    %2 = vector.load %arg3[%c0_3, %c0_4] : memref<16x24xf32, #tpu.memory_space<vmem>>, vector<16x24xf32>
    %cst = arith.constant dense<0.000000e+00> : vector<16x256xf32>
    %3 = tpu.matmul %2, %1, %cst {dimension_numbers = #tpu.dot_dimension_numbers<[1], [0], [0], [1], [0, 0, 1, 1], [], []>} : vector<16x24xf32>, vector<24x256xf32>, vector<16x256xf32> -> vector<16x256xf32>
    %c0_5 = arith.constant 0 : index
    %c0_6 = arith.constant 0 : index
    %4 = vector.load %arg4[%c0_5, %c0_6] : memref<16x1xf32, #tpu.memory_space<vmem>>, vector<16x1xf32>
    %5 = vector.broadcast %4 : vector<16x1xf32> to vector<16x256xf32>
    %6 = arith.addf %3, %5 : vector<16x256xf32>
    %c0_7 = arith.constant 0 : index
    %c0_8 = arith.constant 0 : index
    %c0_9 = arith.constant 0 : index
    %7 = vector.load %arg5[%c0_7, %c0_8, %c0_9] : memref<1x16x256xf32, #tpu.memory_space<vmem>>, vector<1x16x256xf32>
    %8 = vector.shape_cast %7 : vector<1x16x256xf32> to vector<16x256xf32>
    %9 = vector.shape_cast %6 : vector<16x256xf32> to vector<1x16x256xf32>
    tpu.vector_store %arg5[%c0_7, %c0_8, %c0_9], %9 {strides = array<i32>} : memref<1x16x256xf32, #tpu.memory_space<vmem>>, vector<1x16x256xf32>,
    return
  }
  func.func @transform_0(%arg0: i32, %arg1: i32) -> (i32, i32, i32, i32) {
    %c0_i32 = arith.constant 0 : i32
    %c0_i32_0 = arith.constant 0 : i32
    %c0_i32_1 = arith.constant 0 : i32
    return %c0_i32, %arg0, %c0_i32_0, %arg1 : i32, i32, i32, i32
  }
  func.func @transform_1(%arg0: i32, %arg1: i32) -> (i32, i32) {
    %c0_i32 = arith.constant 0 : i32
    %c0_i32_0 = arith.constant 0 : i32
    %c0_i32_1 = arith.constant 0 : i32
    return %c0_i32, %c0_i32_0 : i32, i32
  }
  func.func @transform_2(%arg0: i32, %arg1: i32) -> (i32, i32) {
    %c0_i32 = arith.constant 0 : i32
    %c0_i32_0 = arith.constant 0 : i32
    %c0_i32_1 = arith.constant 0 : i32
    return %c0_i32, %c0_i32_0 : i32, i32
  }
  func.func @transform_3(%arg0: i32, %arg1: i32) -> (i32, i32, i32) {
    %c0_i32 = arith.constant 0 : i32
    %c0_i32_0 = arith.constant 0 : i32
    return %arg0, %c0_i32, %arg1 : i32, i32, i32
  }
}

</mosaic_0001>

<llo_original>
// kernel: tpu_custom_call.1
$region0: #{tpu_custom_call.1}
  #allocation0 [shape = 'u32[]', space=smem, size = 0x4, offset = 0x4, fixed_abs, tag = 'smem constant byte address 0x4 - core index']
  #allocation1 [shape = 'u32[144,128]{1,0:T(1,128)}', space=vmem, size = 0x12000, scoped, tag = 'internal scratch']
  %s0 = inlined_call_operand.hbm [shape: f32[3,2,8,256], index: 0, kind: input, shape index: {}]
  %s1 = inlined_call_operand.vmem [shape: f32[16,24], index: 1, kind: input, shape index: {}]
  %s2 = inlined_call_operand.vmem [shape: f32[16,1], index: 2, kind: input, shape index: {}]
  %s3 = inlined_call_operand.hbm [shape: f32[2,16,256], index: 3, kind: output, shape index: {}]
  %s4 = sld [smem:[#allocation0]]
  $region49: #{tpu_custom_call.1} parent=0
    _
  %s6 = ssub.s32 1, %s4
  %s7 = scalar_select 0, %s6, %s4
  $region1: #{tpu_custom_call.1} parent=0
    #allocation2 [shape = 'u8[49152]{0}', space=vmem, size = 0xc000, scoped, tag = 'input window, operand 0']
    #allocation3 [shape = 's32[2]{0}', space=sflag, size = 0x8, scoped, tag = 'scoped memory for tpu_custom_call.1']
    #allocation4 [shape = 's32[2]{0}', space=sflag, size = 0x8, scoped, tag = 'scoped memory for tpu_custom_call.1']
    #allocation5 [shape = 'u8[32768]{0}', space=vmem, size = 0x8000, scoped, tag = 'output window, operand 0']
    %8 = vsyncpa [#allocation3], 0
    %s9 = scalar_lea.sflag [#allocation3], 1
    %10 = vsyncpa %s9, 0
    %11 = vsyncpa [#allocation4], 0
    %s12 = scalar_lea.sflag [#allocation4], 1
    %13 = vsyncpa %s12, 0
    loop: start=0, step=1, limit=4
    $region2: #{tpu_custom_call.1} parent=1 // loop_pre_header
      _
    $region3: #{tpu_custom_call.1} parent=1 // loop_header
      %s15 = sphi 0, %s19
      %p16 = scmp.ge.s32.totalorder %s15, 4
      %s22 = sphi 0, %s34
      %s23 = sphi 0, %s30
      %s24 = sphi 0, %s22
      %s25 = sphi 0, %s23
      %s26 = sphi 0, %s24
      %s27 = sphi 0, %s25
      %s39 = sphi 0, %s41
      %s42 = sphi 0, %s39
      %s43 = sphi 0, %s42
      %s59 = sphi 0, %s43
      %s63 = sphi 0, %s63
      %s65 = sphi 0, %s63
      %s66 = sphi 0, %s65
      %s80 = sphi 0, %s66
      %s84 = sphi 0, %s84
      %s86 = sphi 0, %s84
      %s87 = sphi 0, %s86
      %s101 = sphi 0, %s87
      %s109 = sphi 0, %s111
      %s112 = sphi 0, %s109
      %s113 = sphi 0, %s112
      %s129 = sphi 0, %s113
    $region4: #{tpu_custom_call.1} parent=1 // loop_header_branch
      %18 = sbr.rel (%p16) target = $region8
    $region5: #{tpu_custom_call.1} parent=1 // loop_body
      %s20 = ssub.s32 %s15, 1
      %s21 = ssub.s32 %s15, 2
      %s28 = sadd.s32 1, %s23
      %p29 = scmp.ge.s32.totalorder %s28, 1
      %s30 = scalar_select %p29, 0, %s28
      %s31 = sadd.s32 1, %s22
      %s32 = scalar_select %p29, %s31, %s22
      %p33 = scmp.ge.s32.totalorder %s32, 2
      %s34 = scalar_select %p33, 0, %s32
      %s35 = ssub.s32 %s22, %s34
      %s36 = ssub.s32 %s23, %s30
      %s37 = sor.u32 %s35, %s36
      %p38 = scmp.eq.s32.totalorder %s37, 0
      %s40 = sadd.s32 %s39, 1
      %s41 = scalar_select %p38, %s39, %s40
      %p44 = pneg %p38
      %p45 = scmp.eq.s32.totalorder %s15, 1
      %p46 = por %p44, %p45
      %p47 = scmp.ne.s32.totalorder %s39, %s42
      %p48 = scmp.eq.s32.totalorder %s15, 0
      %p49 = por %p47, %p48
      %p50 = scmp.ne.s32.totalorder %s39, %s42
      %p51 = scmp.eq.s32.totalorder %s20, 1
      %p52 = por %p50, %p51
      %p53 = scmp.ne.s32.totalorder %s42, %s43
      %p54 = scmp.eq.s32.totalorder %s20, 0
      %p55 = por %p53, %p54
      %p56 = scmp.ne.s32.totalorder %s42, %s43
      %p57 = scmp.eq.s32.totalorder %s21, 1
      %p58 = por %p56, %p57
      %p60 = scmp.ne.s32.totalorder %s43, %s59
      %p61 = scmp.eq.s32.totalorder %s21, 0
      %p62 = por %p60, %p61
      %s64 = sadd.s32 %s63, 1
      %p67 = scmp.eq.s32.totalorder %s15, 1
      %p68 = scmp.ne.s32.totalorder %s63, %s65
      %p69 = scmp.eq.s32.totalorder %s15, 0
      %p70 = por %p68, %p69
      %p71 = scmp.ne.s32.totalorder %s63, %s65
      %p72 = scmp.eq.s32.totalorder %s20, 1
      %p73 = por %p71, %p72
      %p74 = scmp.ne.s32.totalorder %s65, %s66
      %p75 = scmp.eq.s32.totalorder %s20, 0
      %p76 = por %p74, %p75
      %p77 = scmp.ne.s32.totalorder %s65, %s66
      %p78 = scmp.eq.s32.totalorder %s21, 1
      %p79 = por %p77, %p78
      %p81 = scmp.ne.s32.totalorder %s66, %s80
      %p82 = scmp.eq.s32.totalorder %s21, 0
      %p83 = por %p81, %p82
      %s85 = sadd.s32 %s84, 1
      %p88 = scmp.eq.s32.totalorder %s15, 1
      %p89 = scmp.ne.s32.totalorder %s84, %s86
      %p90 = scmp.eq.s32.totalorder %s15, 0
      %p91 = por %p89, %p90
      %p92 = scmp.ne.s32.totalorder %s84, %s86
      %p93 = scmp.eq.s32.totalorder %s20, 1
      %p94 = por %p92, %p93
      %p95 = scmp.ne.s32.totalorder %s86, %s87
      %p96 = scmp.eq.s32.totalorder %s20, 0
      %p97 = por %p95, %p96
      %p98 = scmp.ne.s32.totalorder %s86, %s87
      %p99 = scmp.eq.s32.totalorder %s21, 1
      %p100 = por %p98, %p99
      %p102 = scmp.ne.s32.totalorder %s87, %s101
      %p103 = scmp.eq.s32.totalorder %s21, 0
      %p104 = por %p102, %p103
      %s105 = ssub.s32 %s22, %s34
      %s106 = ssub.s32 %s23, %s30
      %s107 = sor.u32 %s105, %s106
      %p108 = scmp.eq.s32.totalorder %s107, 0
      %s110 = sadd.s32 %s109, 1
      %s111 = scalar_select %p108, %s109, %s110
      %p114 = pneg %p108
      %p115 = scmp.eq.s32.totalorder %s15, 1
      %p116 = por %p114, %p115
      %p117 = scmp.ne.s32.totalorder %s109, %s112
      %p118 = scmp.eq.s32.totalorder %s15, 0
      %p119 = por %p117, %p118
      %p120 = scmp.ne.s32.totalorder %s109, %s112
      %p121 = scmp.eq.s32.totalorder %s20, 1
      %p122 = por %p120, %p121
      %p123 = scmp.ne.s32.totalorder %s112, %s113
      %p124 = scmp.eq.s32.totalorder %s20, 0
      %p125 = por %p123, %p124
      %p126 = scmp.ne.s32.totalorder %s112, %s113
      %p127 = scmp.eq.s32.totalorder %s21, 1
      %p128 = por %p126, %p127
      %p130 = scmp.ne.s32.totalorder %s113, %s129
      %p131 = scmp.eq.s32.totalorder %s21, 0
      %p132 = por %p130, %p131
      %p133 = scmp.le.s32.totalorder 1, %s15
      %p134 = scmp.lt.s32.totalorder %s15, 3
      %p135 = pnand %p133, %p134
      %p136 = pneg %p135
      // Predicated region
      $region9: #{tpu_custom_call.1} parent=5 // pred_check
        _
      $region10: #{tpu_custom_call.1} parent=5 // pred_check_branch
        %138 = sbr.rel (%p135) target = $region12
      $region11: #{tpu_custom_call.1} parent=5 // pred_region
        %s139 = ssub.s32 %s15, 1
        // Predicated region
        $region13: #{tpu_custom_call.1} parent=11 // pred_check
          %p140 = pneg %p76
        $region14: #{tpu_custom_call.1} parent=11 // pred_check_branch
          %142 = sbr.rel (%p140) target = $region16
        $region15: #{tpu_custom_call.1} parent=11 // pred_region
          _
        $region16: #{tpu_custom_call.1} parent=11 // pred_fallthru
          _
        // Predicated region
        $region17: #{tpu_custom_call.1} parent=11 // pred_check
          %p143 = pneg %p97
        $region18: #{tpu_custom_call.1} parent=11 // pred_check_branch
          %145 = sbr.rel (%p143) target = $region20
        $region19: #{tpu_custom_call.1} parent=11 // pred_region
          _
        $region20: #{tpu_custom_call.1} parent=11 // pred_fallthru
          _
      $region12: #{tpu_custom_call.1} parent=5 // pred_fallthru
        _
      %p146 = scmp.lt.s32.totalorder %s15, 2
      // Predicated region
      $region21: #{tpu_custom_call.1} parent=5 // pred_check
        %p147 = pneg %p146
      $region22: #{tpu_custom_call.1} parent=5 // pred_check_branch
        %149 = sbr.rel (%p147) target = $region24
      $region23: #{tpu_custom_call.1} parent=5 // pred_region
        // Predicated region
        $region25: #{tpu_custom_call.1} parent=23 // pred_check
          %p150 = pneg %p49
        $region26: #{tpu_custom_call.1} parent=23 // pred_check_branch
          %152 = sbr.rel (%p150) target = $region28
        $region27: #{tpu_custom_call.1} parent=23 // pred_region
          %s153 = sand.u32 %s39, 1
          %s154 = scalar_lea.sflag [#allocation3], %s153
          %s155 = sand.u32 %s39, 1
          %s156 = smul.addr %s155, 48
          %s157 = scalar_lea.vmem [#allocation2], %s156
          %s158 = smul.u32 2, %s23
          %s160 = ssub.s32 768, 768
          %161 = vsyncadd %s154, %s160
          %s162 = smul.addr %s22, 2
          %s163 = sadd.s32 %s158, %s162
          %s164 = smul.addr %s163, 128
          %s165 = scalar_lea.hbm %s0, %s164
          %s166 = sshll.u32 %s157, 4
          %s167 = int_to_ptr.vmem [resolvable:$true] %s166
          %172 = dma.hbm_to_vmem [thread:$0]  %s165, 768, %s167, %s154, 512, 256, 16
        $region28: #{tpu_custom_call.1} parent=23 // pred_fallthru
          _
      $region24: #{tpu_custom_call.1} parent=5 // pred_fallthru
        _
      %p173 = scmp.le.s32.totalorder 1, %s15
      %p174 = scmp.lt.s32.totalorder %s15, 3
      %p175 = pnand %p173, %p174
      %p176 = pneg %p175
      // Predicated region
      $region29: #{tpu_custom_call.1} parent=5 // pred_check
        _
      $region30: #{tpu_custom_call.1} parent=5 // pred_check_branch
        %178 = sbr.rel (%p175) target = $region32
      $region31: #{tpu_custom_call.1} parent=5 // pred_region
        %s179 = ssub.s32 %s15, 1
        %s180 = sand.u32 %s42, 1
        %s181 = scalar_lea.sflag [#allocation3], %s180
        %s182 = sand.u32 %s42, 1
        %s183 = smul.addr %s182, 48
        %s184 = scalar_lea.vmem [#allocation2], %s183
        // Predicated region
        $region33: #{tpu_custom_call.1} parent=31 // pred_check
          %p185 = pneg %p55
        $region34: #{tpu_custom_call.1} parent=31 // pred_check_branch
          %187 = sbr.rel (%p185) target = $region36
        $region35: #{tpu_custom_call.1} parent=31 // pred_region
          %188 = dma.done %s181, 768
        $region36: #{tpu_custom_call.1} parent=31 // pred_fallthru
          _
        %s189 = sand.u32 %s42, 1
        %s190 = scalar_lea.sflag [#allocation3], %s189
        %s191 = sand.u32 %s42, 1
        %s192 = smul.addr %s191, 48
        %s193 = scalar_lea.vmem [#allocation2], %s192
        %p194 = pneg %p55
        %p195 = pneg %p52
        %p196 = pneg %p76
        %p197 = pneg %p73
        %p198 = pneg %p97
        %p199 = pneg %p94
        %p200 = pneg %p125
        %p201 = pneg %p122
        %s202 = sand.u32 %s112, 1
        %s203 = scalar_lea.sflag [#allocation4], %s202
        %s204 = sand.u32 %s112, 1
        %s205 = smul.addr %s204, 32
        %s206 = scalar_lea.vmem [#allocation5], %s205
        %s207 = smul.u32 2, %s25
        %s208 = smul.u32 2, %s25
        %v209 = vld [vmem:[%s184] sm:$0xff]
        %v210 = vld [vmem:[%s184 + $0x8] sm:$0xff]
        %v211 = vld [vmem:[%s184 + $0x10] sm:$0xff]
        %v212 = vld [vmem:[%s184 + $0x18] sm:$0xff]
        %v213 = vld [vmem:[%s184 + $0x20] sm:$0xff]
        %v214 = vld [vmem:[%s184 + $0x28] sm:$0xff]
        %v215 = vld [vmem:[%s1] sm:$0xff]
        %v216 = vld [vmem:[%s1 + $0x8] sm:$0xff]
        %v217 = vld [vmem:[%s2] sm:$0xff]
        %v218 = vld [vmem:[%s2 + $0x8] sm:$0xff]
        %220 = vset.pattern.permute.xlu0 0
        %221 = vperm.xlu0 %220, %v217
        %v222 = vpop.permute.xlu0 %221
        %225 = vset.pattern.permute.xlu0 0
        %226 = vperm.xlu0 %225, %v218
        %v227 = vpop.permute.xlu0 %226
        %vm229 = vcmask 195584
        %v231 = vsel %vm229, %v215, 0
        %v234 = vsel %vm229, %v216, 0
        %236 = vmatprep.subr.mxu0 %v210
        %237 = vmatpush1.msra.mxu0 %v209
        %238 = vmatprep.subr.mxu0 %v212
        %239 = vmatpush1.msra.mxu0 %v211
        %240 = vmatprep.subr.mxu0 %v214
        %241 = vmatpush1.msra.mxu0 %v213
        %242 = vmatprep.subr.mxu0 0.0
        %243 = vmatpush1.msra.mxu0 0.0
        %244 = vmatprep.subr.mxu0 0.0
        %245 = vmatpush1.msra.mxu0 0.0
        %246 = vmatprep.subr.mxu0 0.0
        %247 = vmatpush1.msra.mxu0 0.0
        %248 = vmatprep.subr.mxu0 0.0
        %249 = vmatpush1.msra.mxu0 0.0
        %250 = vmatprep.subr.mxu0 0.0
        %251 = vmatpush1.msra.mxu0 0.0
        %252 = vmatprep.subr.mxu0 0.0
        %253 = vmatpush1.msra.mxu0 0.0
        %254 = vmatprep.subr.mxu0 0.0
        %255 = vmatpush1.msra.mxu0 0.0
        %256 = vmatprep.subr.mxu0 0.0
        %257 = vmatpush1.msra.mxu0 0.0
        %258 = vmatprep.subr.mxu0 0.0
        %259 = vmatpush1.msra.mxu0 0.0
        %260 = vmatprep.subr.mxu0 0.0
        %261 = vmatpush1.msra.mxu0 0.0
        %262 = vmatprep.subr.mxu0 0.0
        %263 = vmatpush1.msra.mxu0 0.0
        %264 = vmatprep.subr.mxu0 0.0
        %265 = vmatpush1.msra.mxu0 0.0
        %266 = vmatprep.subr.mxu0 0.0
        %267 = vmatpush1.msra.mxu0 0.0
        %268 = vmatprep.subr.mxu0 0.0
        %269 = vmatpush1.msra.mxu0 0.0
        %270 = vmatprep.subr.mxu0 0.0
        %271 = vmatpush1.msra.mxu0 0.0
        %272 = vmatprep.subr.mxu0 0.0
        %273 = vmatpush1.msra.mxu0 0.0
        %274 = vmatprep.subr.mxu0 0.0
        %275 = vmatpush1.msra.mxu0 0.0
        %276 = vmatprep.subr.mxu0 0.0
        %277 = vmatpush1.msra.mxu0 0.0
        %278 = vmatprep.subr.mxu0 0.0
        %279 = vmatpush1.msra.mxu0 0.0
        %280 = vmatprep.subr.mxu0 0.0
        %281 = vmatpush1.msra.mxu0 0.0
        %282 = vmatprep.subr.mxu0 0.0
        %283 = vmatpush1.msra.mxu0 0.0
        %284 = vmatprep.subr.mxu0 0.0
        %285 = vmatpush1.msra.mxu0 0.0
        %286 = vmatprep.subr.mxu0 0.0
        %287 = vmatpush1.msra.mxu0 0.0
        %288 = vmatprep.subr.mxu0 0.0
        %289 = vmatpush1.msra.mxu0 0.0
        %290 = vmatprep.subr.mxu0 0.0
        %291 = vmatpush1.msra.mxu0 0.0
        %292 = vmatprep.subr.mxu0 0.0
        %293 = vmatpush1.msra.mxu0 0.0
        %294 = vmatprep.subr.mxu0 0.0
        %295 = vmatpush1.msra.mxu0 0.0
        %296 = vmatprep.subr.mxu0 0.0
        %297 = vmatpush1.msra.mxu0 0.0
        %298 = vmatprep.subr.mxu0 0.0
        %299 = vmatpush1.msra.mxu0 0.0
        %300 = vmatprep.mubr.f32.mxu0 0.0
        %301 = vmatmul.mubr.f32.gmra.mrb[0].mxu0 %v231
        %v302 = vpop.f32.mrb[0].mxu0
        %v303 = vadd.f32 %v222, %v302
        %v304 = vpop.f32.mrb[0].mxu0
        %v305 = vadd.f32 %v222, %v304
        %306 = vmatprep.mubr.f32.mxu0 0.0
        %307 = vmatmul.mubr.f32.gmra.mrb[0].mxu0 %v234
        %v308 = vpop.f32.mrb[0].mxu0
        %v309 = vadd.f32 %v227, %v308
        %v310 = vpop.f32.mrb[0].mxu0
        %v311 = vadd.f32 %v227, %v310
        %312 = vdwg.mxu0
        %313 = vst [vmem:[%s206] sm:$0xff] %v303
        %314 = vst [vmem:[%s206 + $0x8] sm:$0xff] %v305
        %315 = vst [vmem:[%s206 + $0x10] sm:$0xff] %v309
        %316 = vst [vmem:[%s206 + $0x18] sm:$0xff] %v311
        %s317 = sand.u32 %s112, 1
        %s318 = scalar_lea.sflag [#allocation4], %s317
        %s319 = sand.u32 %s112, 1
        %s320 = smul.addr %s319, 32
        %s321 = scalar_lea.vmem [#allocation5], %s320
        // Predicated region
        $region37: #{tpu_custom_call.1} parent=31 // pred_check
          %p322 = pneg %p122
        $region38: #{tpu_custom_call.1} parent=31 // pred_check_branch
          %324 = sbr.rel (%p322) target = $region40
        $region39: #{tpu_custom_call.1} parent=31 // pred_region
          %s325 = smul.u32 2, %s25
          %s327 = ssub.s32 512, 512
          %328 = vsyncadd %s318, %s327
          %s329 = smul.addr %s24, 4
          %s330 = sadd.s32 %s325, %s329
          %s331 = smul.addr %s330, 128
          %s332 = scalar_lea.hbm %s3, %s331
          %s333 = sshll.u32 %s321, 4
          %s334 = int_to_ptr.vmem [resolvable:$true] %s333
          %339 = dma.vmem_to_hbm [thread:$0]  %s334, 512, %s332, %s318, 256, 256, 16
        $region40: #{tpu_custom_call.1} parent=31 // pred_fallthru
          _
      $region32: #{tpu_custom_call.1} parent=5 // pred_fallthru
        _
      %p340 = scmp.le.s32.totalorder 2, %s15
      // Predicated region
      $region41: #{tpu_custom_call.1} parent=5 // pred_check
        %p341 = pneg %p340
      $region42: #{tpu_custom_call.1} parent=5 // pred_check_branch
        %343 = sbr.rel (%p341) target = $region44
      $region43: #{tpu_custom_call.1} parent=5 // pred_region
        %s344 = ssub.s32 %s15, 2
        // Predicated region
        $region45: #{tpu_custom_call.1} parent=43 // pred_check
          %p345 = pneg %p128
        $region46: #{tpu_custom_call.1} parent=43 // pred_check_branch
          %347 = sbr.rel (%p345) target = $region48
        $region47: #{tpu_custom_call.1} parent=43 // pred_region
          %s348 = sand.u32 %s113, 1
          %s349 = scalar_lea.sflag [#allocation4], %s348
          %s350 = sand.u32 %s113, 1
          %s351 = smul.addr %s350, 32
          %s352 = scalar_lea.vmem [#allocation5], %s351
          %353 = dma.done %s349, 512
        $region48: #{tpu_custom_call.1} parent=43 // pred_fallthru
          _
      $region44: #{tpu_custom_call.1} parent=5 // pred_fallthru
        _
    $region6: #{tpu_custom_call.1} parent=1 // loop_footer
      %s19 = sadd.s32 1, %s15
    $region7: #{tpu_custom_call.1} parent=1 // loop_footer_branch
      %14 = sbr.rel target = $region3
    $region8: #{tpu_custom_call.1} parent=1 // loop_exit
      _
    %354 = vsyncpa [#allocation3], 1
    %s355 = scalar_lea.sflag [#allocation3], 1
    %356 = vsyncpa %s355, 1
    %357 = vsyncpa [#allocation4], 1
    %s358 = scalar_lea.sflag [#allocation4], 1
    %359 = vsyncpa %s358, 1

</llo_original>
